<compile_context>
chip_gen: v7x
topology: tpu7x:2x2x1
jax: 0.10.0
libtpu: 0.0.40
codegen_flags: <defaults>
</compile_context>

<pallas_src>
import functools

import jax
import jax.numpy as jnp
from jax import lax
from jax.experimental import pallas as pl
from jax.experimental.pallas import tpu as pltpu


# --------------------------------------------------------------------------
# Pallas kernel: one row-tile of the flattened (B*S, D) input per grid step.
# --------------------------------------------------------------------------
def vlpe_kernel(x_ref, wx_ref, wp_ref, b_ref, o_ref, *, seq_len, tile_rows):
    # Global row index of each row in this tile -> position within its sequence.
    row0 = pl.program_id(0) * tile_rows
    rows = row0 + lax.broadcasted_iota(jnp.int32, (tile_rows, o_ref.shape[-1]), 0)
    pos = (rows % seq_len).astype(jnp.float32)

    x = x_ref[...]
    # Fused projection: x @ W_x  (+ pos column handled as a rank-1 update).
    y = jnp.dot(x, wx_ref[...], preferred_element_type=jnp.float32)
    y = y + pos * wp_ref[...] + b_ref[...]
    o_ref[...] = jnp.maximum(y, 0.0).astype(o_ref.dtype)


# --------------------------------------------------------------------------
# Wrapper: equivalent of VLPositionalEncoding.forward
#   x:      (B, S, D)
#   weight: (D, D+1)   -- torch nn.Linear(D+1, D).weight
#   bias:   (D,)       -- torch nn.Linear(D+1, D).bias
# --------------------------------------------------------------------------
def vl_positional_encoding(x, weight, bias, *, tile_rows=None):
    B, S, D = x.shape
    n_rows = B * S
    x2 = x.reshape(n_rows, D)

    wx = jnp.transpose(weight[:, :D])       # (D, D), lane-dense, pre-transposed
    wp = weight[:, D].reshape(1, D)          # position column of the weight
    b = bias.reshape(1, D)

    if tile_rows is None:
        # Multiple of 8 sublanes; up to 256 rows per step for MXU/DMA efficiency.
        tile_rows = min(256, ((n_rows + 7) // 8) * 8)

    grid = (pl.cdiv(n_rows, tile_rows),)
    kernel = functools.partial(vlpe_kernel, seq_len=S, tile_rows=tile_rows)

    out2 = pl.pallas_call(
        kernel,
        out_shape=jax.ShapeDtypeStruct((n_rows, D), x.dtype),
        grid_spec=pltpu.PrefetchScalarGridSpec(
            num_scalar_prefetch=0,
            grid=grid,
            in_specs=[
                pl.BlockSpec((tile_rows, D), lambda i: (i, 0)),   # x rows
                pl.BlockSpec((D, D), lambda i: (0, 0)),           # W_x (resident)
                pl.BlockSpec((1, D), lambda i: (0, 0)),           # w_pos
                pl.BlockSpec((1, D), lambda i: (0, 0)),           # bias
            ],
            out_specs=pl.BlockSpec((tile_rows, D), lambda i: (i, 0)),
        ),
        compiler_params=pltpu.CompilerParams(
            dimension_semantics=("parallel",)),
    )(x2, wx, wp, b)
    return out2.reshape(B, S, D)


# --------------------------------------------------------------------------
# Pure-JAX reference (mirrors the PyTorch forward exactly: concat + linear + relu)
# --------------------------------------------------------------------------
def ref_forward(x, weight, bias):
    B, S, D = x.shape
    pos = jnp.arange(S, dtype=x.dtype).reshape(1, S, 1)
    pos = jnp.broadcast_to(pos, (B, S, 1))
    xp = jnp.concatenate([x, pos], axis=2)           # (B, S, D+1)
    y = jnp.einsum('bsk,dk->bsd', xp, weight) + bias
    return jnp.maximum(y, 0.0)


if __name__ == "__main__":
    B, S, D = 2, 8, 32

    key = jax.random.PRNGKey(0)
    k_x, k_w, k_b = jax.random.split(key, 3)
    x = jax.random.normal(k_x, (B, S, D), jnp.float32)
    # nn.Linear(D+1, D): weight (D, D+1), bias (D,)
    weight = 0.1 * jax.random.normal(k_w, (D, D + 1), jnp.float32)
    bias = 0.1 * jax.random.normal(k_b, (D,), jnp.float32)

    out = vl_positional_encoding(x, weight, bias)
    out = jax.block_until_ready(out)

    ref = ref_forward(x, weight, bias)

    assert out.shape == (B, S, D)
    assert jnp.allclose(out, ref, atol=1e-5, rtol=1e-5), \
        f"max abs err {jnp.max(jnp.abs(out - ref))}"
    print("KERNEL_OK")
</pallas_src>

<mosaic_0001>
module attributes {stable_mosaic.version = 11 : i64} {
  func.func @vlpe_kernel(%arg0: i32, %arg1: memref<16x32xf32, #tpu.memory_space<vmem>>, %arg2: memref<32x32xf32, #tpu.memory_space<vmem>>, %arg3: memref<1x32xf32, #tpu.memory_space<vmem>>, %arg4: memref<1x32xf32, #tpu.memory_space<vmem>>, %arg5: memref<16x32xf32, #tpu.memory_space<vmem>>) attributes {dimension_semantics = [#tpu.dimension_semantics<parallel>], iteration_bounds = array<i64: 1>, scalar_prefetch = 0 : i64, scratch_operands = 0 : i64, tpu.core_type = #tpu.core_type<tc>, window_params = [{transform_indices = @transform_0, window_bounds = array<i64: 16, 32>}, {pipeline_mode = #tpu.pipeline_mode<synchronous>, transform_indices = @transform_1, window_bounds = array<i64: 32, 32>}, {pipeline_mode = #tpu.pipeline_mode<synchronous>, transform_indices = @transform_2, window_bounds = array<i64: 1, 32>}, {pipeline_mode = #tpu.pipeline_mode<synchronous>, transform_indices = @transform_3, window_bounds = array<i64: 1, 32>}, {transform_indices = @transform_4, window_bounds = array<i64: 16, 32>}]} {
    %c16_i32 = arith.constant 16 : i32
    %0 = arith.muli %arg0, %c16_i32 : i32
    %1 = tpu.iota {dimensions = array<i32: 0>} : vector<16x32xi32>
    %2 = vector.broadcast %0 : i32 to vector<16x32xi32>
    %3 = arith.addi %2, %1 : vector<16x32xi32>
    %c8_i32 = arith.constant 8 : i32
    %c0_i32 = arith.constant 0 : i32
    %4 = arith.cmpi eq, %c8_i32, %c0_i32 : i32
    %c1_i32 = arith.constant 1 : i32
    %5 = arith.select %4, %c1_i32, %c8_i32 : i32
    %6 = vector.broadcast %5 : i32 to vector<16x32xi32>
    %7 = arith.remsi %3, %6 : vector<16x32xi32>
    %c0_i32_0 = arith.constant 0 : i32
    %8 = vector.broadcast %c0_i32_0 : i32 to vector<16x32xi32>
    %9 = arith.cmpi ne, %7, %8 : vector<16x32xi32>
    %c0_i32_1 = arith.constant 0 : i32
    %10 = vector.broadcast %c0_i32_1 : i32 to vector<16x32xi32>
    %11 = arith.cmpi slt, %7, %10 : vector<16x32xi32>
    %c0_i32_2 = arith.constant 0 : i32
    %12 = arith.cmpi slt, %5, %c0_i32_2 : i32
    %13 = vector.broadcast %12 : i1 to vector<16x32xi1>
    %14 = vector.broadcast %13 : vector<16x32xi1> to vector<16x32xi1>
    %15 = arith.xori %11, %14 : vector<16x32xi1>
    %16 = arith.andi %15, %9 : vector<16x32xi1>
    %17 = vector.broadcast %5 : i32 to vector<16x32xi32>
    %18 = arith.addi %7, %17 : vector<16x32xi32>
    %19 = arith.select %16, %18, %7 : vector<16x32xi1>, vector<16x32xi32>
    %20 = arith.sitofp %19 : vector<16x32xi32> to vector<16x32xf32>
    %c0 = arith.constant 0 : index
    %c0_3 = arith.constant 0 : index
    %21 = vector.load %arg1[%c0, %c0_3] : memref<16x32xf32, #tpu.memory_space<vmem>>, vector<16x32xf32>
    %c0_4 = arith.constant 0 : index
    %c0_5 = arith.constant 0 : index
    %22 = vector.load %arg2[%c0_4, %c0_5] : memref<32x32xf32, #tpu.memory_space<vmem>>, vector<32x32xf32>
    %cst = arith.constant dense<0.000000e+00> : vector<16x32xf32>
    %23 = tpu.matmul %21, %22, %cst {dimension_numbers = #tpu.dot_dimension_numbers<[1], [0], [0], [1], [0, 0, 1, 1], [], []>} : vector<16x32xf32>, vector<32x32xf32>, vector<16x32xf32> -> vector<16x32xf32>
    %c0_6 = arith.constant 0 : index
    %c0_7 = arith.constant 0 : index
    %24 = vector.load %arg3[%c0_6, %c0_7] : memref<1x32xf32, #tpu.memory_space<vmem>>, vector<1x32xf32>
    %25 = vector.broadcast %24 : vector<1x32xf32> to vector<16x32xf32>
    %26 = arith.mulf %20, %25 : vector<16x32xf32>
    %27 = arith.addf %23, %26 : vector<16x32xf32>
    %c0_8 = arith.constant 0 : index
    %c0_9 = arith.constant 0 : index
    %28 = vector.load %arg4[%c0_8, %c0_9] : memref<1x32xf32, #tpu.memory_space<vmem>>, vector<1x32xf32>
    %29 = vector.broadcast %28 : vector<1x32xf32> to vector<16x32xf32>
    %30 = arith.addf %27, %29 : vector<16x32xf32>
    %cst_10 = arith.constant 0.000000e+00 : f32
    %31 = vector.broadcast %cst_10 : f32 to vector<16x32xf32>
    %32 = arith.maximumf %30, %31 : vector<16x32xf32>
    %c0_11 = arith.constant 0 : index
    %c0_12 = arith.constant 0 : index
    %33 = vector.load %arg5[%c0_11, %c0_12] : memref<16x32xf32, #tpu.memory_space<vmem>>, vector<16x32xf32>
    tpu.vector_store %arg5[%c0_11, %c0_12], %32 {strides = array<i32>} : memref<16x32xf32, #tpu.memory_space<vmem>>, vector<16x32xf32>,
    return
  }
  func.func @transform_0(%arg0: i32) -> (i32, i32) {
    %c0_i32 = arith.constant 0 : i32
    %c0_i32_0 = arith.constant 0 : i32
    return %arg0, %c0_i32 : i32, i32
  }
  func.func @transform_1(%arg0: i32) -> (i32, i32) {
    %c0_i32 = arith.constant 0 : i32
    %c0_i32_0 = arith.constant 0 : i32
    %c0_i32_1 = arith.constant 0 : i32
    return %c0_i32, %c0_i32_0 : i32, i32
  }
  func.func @transform_2(%arg0: i32) -> (i32, i32) {
    %c0_i32 = arith.constant 0 : i32
    %c0_i32_0 = arith.constant 0 : i32
    %c0_i32_1 = arith.constant 0 : i32
    return %c0_i32, %c0_i32_0 : i32, i32
  }
  func.func @transform_3(%arg0: i32) -> (i32, i32) {
    %c0_i32 = arith.constant 0 : i32
    %c0_i32_0 = arith.constant 0 : i32
    %c0_i32_1 = arith.constant 0 : i32
    return %c0_i32, %c0_i32_0 : i32, i32
  }
  func.func @transform_4(%arg0: i32) -> (i32, i32) {
    %c0_i32 = arith.constant 0 : i32
    %c0_i32_0 = arith.constant 0 : i32
    return %arg0, %c0_i32 : i32, i32
  }
}

</mosaic_0001>

<llo_original>
// kernel: tpu_custom_call.1
$region0: #{tpu_custom_call.1}
  #allocation0 [shape = 'u32[]', space=smem, size = 0x4, offset = 0x4, fixed_abs, tag = 'smem constant byte address 0x4 - core index']
  #allocation1 [shape = 'u32[144,128]{1,0:T(1,128)}', space=vmem, size = 0x12000, scoped, tag = 'internal scratch']
  %s0 = inlined_call_operand.hbm [shape: f32[16,32], index: 0, kind: input, shape index: {}]
  %s1 = inlined_call_operand.hbm [shape: f32[32,32], index: 1, kind: input, shape index: {}]
  %s2 = inlined_call_operand.vmem [shape: f32[1,32], index: 2, kind: input, shape index: {}]
  %s3 = inlined_call_operand.vmem [shape: f32[1,32], index: 3, kind: input, shape index: {}]
  %s4 = inlined_call_operand.hbm [shape: f32[16,32], index: 4, kind: output, shape index: {}]
  %s5 = sld [smem:[#allocation0]]
  $region34: #{tpu_custom_call.1} parent=0
    _
  %s7 = ssub.s32 1, %s5
  %s8 = scalar_select 0, %s7, %s5
  $region1: #{tpu_custom_call.1} parent=0
    #allocation2 [shape = 'u8[8192]{0}', space=vmem, size = 0x2000, scoped, tag = 'input window, operand 0, single buffered']
    #allocation3 [shape = 's32[1]{0}', space=sflag, size = 0x4, scoped, tag = 'scoped memory for tpu_custom_call.1']
    #allocation4 [shape = 's32[1]{0}', space=sflag, size = 0x4, scoped, tag = 'scoped memory for tpu_custom_call.1']
    #allocation5 [shape = 'u8[16384]{0}', space=vmem, size = 0x4000, scoped, tag = 'input window, operand 1, single buffered']
    #allocation6 [shape = 's32[1]{0}', space=sflag, size = 0x4, scoped, tag = 'scoped memory for tpu_custom_call.1']
    #allocation7 [shape = 'u8[8192]{0}', space=vmem, size = 0x2000, scoped, tag = 'output window, operand 0, single buffered']
    %9 = vsyncpa [#allocation3], 0
    %10 = vsyncpa [#allocation6], 0
    %11 = vsyncpa [#allocation4], 0
    // Predicated region
    $region2: #{tpu_custom_call.1} parent=1 // pred_check
      _
    $region3: #{tpu_custom_call.1} parent=1 // pred_check_branch
      %13 = sbr.rel (0) target = $region5
    $region4: #{tpu_custom_call.1} parent=1 // pred_region
      %s15 = ssub.s32 256, 256
      %16 = vsyncadd [#allocation3], %s15
      %s17 = sshll.u32 [#allocation2], 4
      %s18 = int_to_ptr.vmem [resolvable:$true] %s17
      %23 = dma.hbm_to_vmem [thread:$0]  %s0, 256, %s18, [#allocation3], 128, 128, 8
    $region5: #{tpu_custom_call.1} parent=1 // pred_fallthru
      _
    // Predicated region
    $region6: #{tpu_custom_call.1} parent=1 // pred_check
      _
    $region7: #{tpu_custom_call.1} parent=1 // pred_check_branch
      %25 = sbr.rel (0) target = $region9
    $region8: #{tpu_custom_call.1} parent=1 // pred_region
      %s27 = ssub.s32 512, 512
      %28 = vsyncadd [#allocation6], %s27
      %s29 = sshll.u32 [#allocation5], 4
      %s30 = int_to_ptr.vmem [resolvable:$true] %s29
      %35 = dma.hbm_to_vmem [thread:$0]  %s1, 512, %s30, [#allocation6], 128, 128, 8
    $region9: #{tpu_custom_call.1} parent=1 // pred_fallthru
      _
    // Predicated region
    $region10: #{tpu_custom_call.1} parent=1 // pred_check
      _
    $region11: #{tpu_custom_call.1} parent=1 // pred_check_branch
      %37 = sbr.rel (0) target = $region13
    $region12: #{tpu_custom_call.1} parent=1 // pred_region
      _
    $region13: #{tpu_custom_call.1} parent=1 // pred_fallthru
      _
    // Predicated region
    $region14: #{tpu_custom_call.1} parent=1 // pred_check
      _
    $region15: #{tpu_custom_call.1} parent=1 // pred_check_branch
      %39 = sbr.rel (0) target = $region17
    $region16: #{tpu_custom_call.1} parent=1 // pred_region
      _
    $region17: #{tpu_custom_call.1} parent=1 // pred_fallthru
      _
    // Predicated region
    $region18: #{tpu_custom_call.1} parent=1 // pred_check
      _
    $region19: #{tpu_custom_call.1} parent=1 // pred_check_branch
      %41 = sbr.rel (0) target = $region21
    $region20: #{tpu_custom_call.1} parent=1 // pred_region
      %42 = dma.done [#allocation3], 256
    $region21: #{tpu_custom_call.1} parent=1 // pred_fallthru
      _
    // Predicated region
    $region22: #{tpu_custom_call.1} parent=1 // pred_check
      _
    $region23: #{tpu_custom_call.1} parent=1 // pred_check_branch
      %44 = sbr.rel (0) target = $region25
    $region24: #{tpu_custom_call.1} parent=1 // pred_region
      %45 = dma.done [#allocation6], 512
    $region25: #{tpu_custom_call.1} parent=1 // pred_fallthru
      _
    %s46 = smul.u32 0, 16
    %v47 = vlaneseq
    %v48 = vshrl.u32 %v47, 7
    %v49 = vadd.s32 %v48, 8
    %v50 = vstv %s46
    %v51 = vadd.s32 %v50, %v48
    %v52 = vadd.s32 %v50, %v49
    %vm53 = vcmp.lt.s32.totalorder %v51, 0
    %v54 = vsub.s32 0, %v51
    %v55 = vsel %vm53, %v54, %v51
    %v56 = vshrl.u32 %v55, 3
    %v57 = vand.u32 %v55, 7
    %v58 = vsub.s32 0, %v57
    %v59 = vsel %vm53, %v58, %v57
    %vm60 = vcmp.lt.s32.totalorder %v52, 0
    %v61 = vsub.s32 0, %v52
    %v62 = vsel %vm60, %v61, %v52
    %v63 = vshrl.u32 %v62, 3
    %v64 = vand.u32 %v62, 7
    %v65 = vsub.s32 0, %v64
    %v66 = vsel %vm60, %v65, %v64
    %vm67 = vcmp.ne.s32.totalorder %v59, 0
    %vm68 = vcmp.ne.s32.totalorder %v66, 0
    %vm69 = vcmp.lt.s32.totalorder %v59, 0
    %vm70 = vcmp.lt.s32.totalorder %v66, 0
    %vm71 = vmand %vm69, %vm67
    %vm72 = vmand %vm70, %vm68
    %v73 = vadd.s32 %v59, 8
    %v74 = vadd.s32 %v66, 8
    %v75 = vsel %vm71, %v73, %v59
    %v76 = vsel %vm72, %v74, %v66
    %v77 = vcvt.s32.f32 %v75
    %v78 = vcvt.s32.f32 %v76
    %v79 = vld [vmem:[#allocation2] sm:$0xff]
    %v80 = vld [vmem:[#allocation2 + $0x8] sm:$0xff]
    %v81 = vld [vmem:[#allocation5] sm:$0xff]
    %v82 = vld [vmem:[#allocation5 + $0x8] sm:$0xff]
    %v83 = vld [vmem:[#allocation5 + $0x10] sm:$0xff]
    %v84 = vld [vmem:[#allocation5 + $0x18] sm:$0xff]
    %v85 = vld [vmem:[%s2] sm:$0x1]
    %v87 = vlaneseq
    %v88 = vshrl.u32 %v87, 7
    %v89 = vsub.s32 0, %v88
    %v90 = vrot.slane %v85, %v89
    %v92 = vmul.f32 %v77, %v90
    %v93 = vmul.f32 %v78, %v90
    %vm94 = vcmask 261120
    %v96 = vsel %vm94, %v79, 0
    %v99 = vsel %vm94, %v80, 0
    %101 = vmatprep.subr.mxu0 0.0
    %102 = vmatpush1.msra.mxu0 %v81
    %103 = vmatprep.subr.mxu0 0.0
    %104 = vmatpush1.msra.mxu0 %v82
    %105 = vmatprep.subr.mxu0 0.0
    %106 = vmatpush1.msra.mxu0 %v83
    %107 = vmatprep.subr.mxu0 0.0
    %108 = vmatpush1.msra.mxu0 %v84
    %109 = vmatprep.subr.mxu0 0.0
    %110 = vmatpush1.msra.mxu0 0.0
    %111 = vmatprep.subr.mxu0 0.0
    %112 = vmatpush1.msra.mxu0 0.0
    %113 = vmatprep.subr.mxu0 0.0
    %114 = vmatpush1.msra.mxu0 0.0
    %115 = vmatprep.subr.mxu0 0.0
    %116 = vmatpush1.msra.mxu0 0.0
    %117 = vmatprep.subr.mxu0 0.0
    %118 = vmatpush1.msra.mxu0 0.0
    %119 = vmatprep.subr.mxu0 0.0
    %120 = vmatpush1.msra.mxu0 0.0
    %121 = vmatprep.subr.mxu0 0.0
    %122 = vmatpush1.msra.mxu0 0.0
    %123 = vmatprep.subr.mxu0 0.0
    %124 = vmatpush1.msra.mxu0 0.0
    %125 = vmatprep.subr.mxu0 0.0
    %126 = vmatpush1.msra.mxu0 0.0
    %127 = vmatprep.subr.mxu0 0.0
    %128 = vmatpush1.msra.mxu0 0.0
    %129 = vmatprep.subr.mxu0 0.0
    %130 = vmatpush1.msra.mxu0 0.0
    %131 = vmatprep.subr.mxu0 0.0
    %132 = vmatpush1.msra.mxu0 0.0
    %133 = vmatprep.subr.mxu0 0.0
    %134 = vmatpush1.msra.mxu0 0.0
    %135 = vmatprep.subr.mxu0 0.0
    %136 = vmatpush1.msra.mxu0 0.0
    %137 = vmatprep.subr.mxu0 0.0
    %138 = vmatpush1.msra.mxu0 0.0
    %139 = vmatprep.subr.mxu0 0.0
    %140 = vmatpush1.msra.mxu0 0.0
    %141 = vmatprep.subr.mxu0 0.0
    %142 = vmatpush1.msra.mxu0 0.0
    %143 = vmatprep.subr.mxu0 0.0
    %144 = vmatpush1.msra.mxu0 0.0
    %145 = vmatprep.subr.mxu0 0.0
    %146 = vmatpush1.msra.mxu0 0.0
    %147 = vmatprep.subr.mxu0 0.0
    %148 = vmatpush1.msra.mxu0 0.0
    %149 = vmatprep.subr.mxu0 0.0
    %150 = vmatpush1.msra.mxu0 0.0
    %151 = vmatprep.subr.mxu0 0.0
    %152 = vmatpush1.msra.mxu0 0.0
    %153 = vmatprep.subr.mxu0 0.0
    %154 = vmatpush1.msra.mxu0 0.0
    %155 = vmatprep.subr.mxu0 0.0
    %156 = vmatpush1.msra.mxu0 0.0
    %157 = vmatprep.subr.mxu0 0.0
    %158 = vmatpush1.msra.mxu0 0.0
    %159 = vmatprep.subr.mxu0 0.0
    %160 = vmatpush1.msra.mxu0 0.0
    %161 = vmatprep.subr.mxu0 0.0
    %162 = vmatpush1.msra.mxu0 0.0
    %163 = vmatprep.subr.mxu0 0.0
    %164 = vmatpush1.msra.mxu0 0.0
    %165 = vmatprep.mubr.f32.mxu0 0.0
    %166 = vmatmul.mubr.f32.gmra.mrb[0].mxu0 %v96
    %v167 = vpop.f32.mrb[0].mxu0
    %v168 = vadd.f32 %v92, %v167
    %v169 = vpop.f32.mrb[0].mxu0
    %170 = vmatprep.mubr.f32.mxu0 0.0
    %171 = vmatmul.mubr.f32.gmra.mrb[0].mxu0 %v99
    %v172 = vpop.f32.mrb[0].mxu0
    %v173 = vadd.f32 %v93, %v172
    %v174 = vpop.f32.mrb[0].mxu0
    %175 = vdwg.mxu0
    %v176 = vld [vmem:[%s3] sm:$0x1]
    %v178 = vlaneseq
    %v179 = vshrl.u32 %v178, 7
    %v180 = vsub.s32 0, %v179
    %v181 = vrot.slane %v176, %v180
    %v183 = vadd.f32 %v168, %v181
    %v184 = vadd.f32 %v173, %v181
    %v185 = vmax.f32 %v183, 0.0
    %v186 = vmax.f32 %v184, 0.0
    %187 = vst.msk [vmem:[#allocation7] sm:$0xff] %vm94, %v185
    %188 = vst.msk [vmem:[#allocation7 + $0x8] sm:$0xff] %vm94, %v186
    // Predicated region
    $region26: #{tpu_custom_call.1} parent=1 // pred_check
      _
    $region27: #{tpu_custom_call.1} parent=1 // pred_check_branch
      %190 = sbr.rel (0) target = $region29
    $region28: #{tpu_custom_call.1} parent=1 // pred_region
      %s192 = ssub.s32 256, 256
      %193 = vsyncadd [#allocation4], %s192
      %s194 = sshll.u32 [#allocation7], 4
      %s195 = int_to_ptr.vmem [resolvable:$true] %s194
      %200 = dma.vmem_to_hbm [thread:$0]  %s195, 256, %s4, [#allocation4], 128, 128, 8
    $region29: #{tpu_custom_call.1} parent=1 // pred_fallthru
      _
    // Predicated region
    $region30: #{tpu_custom_call.1} parent=1 // pred_check
      _
    $region31: #{tpu_custom_call.1} parent=1 // pred_check_branch
      %202 = sbr.rel (0) target = $region33
    $region32: #{tpu_custom_call.1} parent=1 // pred_region
      %203 = dma.done [#allocation4], 256
    $region33: #{tpu_custom_call.1} parent=1 // pred_fallthru
      _
    %204 = vsyncpa [#allocation3], 1
    %205 = vsyncpa [#allocation6], 1
    %206 = vsyncpa [#allocation4], 1

</llo_original>
